<compile_context>
chip_gen: v7x
topology: tpu7x:2x2x1
jax: 0.10.0
libtpu: 0.0.40
codegen_flags: <defaults>
</compile_context>

<pallas_src>
import jax
import jax.numpy as jnp
from jax.experimental import pallas as pl
from jax.experimental.pallas import tpu as pltpu

_HIGHEST = jax.lax.Precision.HIGHEST


def _round_up(x, m):
    return (x + m - 1) // m * m


def gat_attention_kernel(adj_ref, z_ref, ssrc_ref, sdst_ref, out_ref):
    """One (dst-tile, head-group) step of the GAT message passing.

    adj_ref  : (TM, Np)    int8      adj[d, s] != 0 iff edge s -> d
    z_ref    : (Np, G*D)   f32/bf16  projected features of the G heads in this group
    ssrc_ref : (G, 1, Np)  f32       a_src . z[s]   (source half of the logit)
    sdst_ref : (G, TM, 1)  f32       a_dst . z[d]   (dest half, this dst tile)
    out_ref  : (TM, G*D)   f32       concatenated per-head outputs for this tile/group
    """
    G = ssrc_ref.shape[0]
    D = out_ref.shape[-1] // G

    # int8 adjacency -> boolean mask, built once per grid step and reused by every
    # head of the group (int8 -> f32 convert is the guaranteed-supported path).
    mask = adj_ref[...].astype(jnp.float32) > 0.0          # (TM, Np)
    neg_big = jnp.float32(-1e30)

    outs = []
    for k in range(G):                                      # static unroll over heads
        s_src = ssrc_ref[k]                                 # (1, Np)
        s_dst = sdst_ref[k]                                 # (TM, 1)
        e = s_dst + s_src                                   # (TM, Np)
        e = jnp.where(e > 0, e, 0.01 * e)                   # leaky_relu(0.01)
        e = jnp.where(mask, e, neg_big)

        # Masked softmax over incoming edges (src axis).  No post-exp mask multiply:
        # clamping the row max makes fully-masked rows underflow exp to exactly 0,
        # so isolated destination nodes come out as 0 (DGL zero-fill), while masked
        # entries of normal rows are exp(-1e30 - m) == 0 anyway.
        m = jnp.maximum(jnp.max(e, axis=-1, keepdims=True), jnp.float32(-1e29))
        p = jnp.exp(e - m)                                  # (TM, Np)
        denom = jnp.maximum(jnp.sum(p, axis=-1, keepdims=True), jnp.float32(1e-30))
        alpha = p * pl.reciprocal(denom, approx=True)       # EUP reciprocal (free slot)

        # 'sum' aggregator on the MXU with f32 accumulation.
        z_k = z_ref[:, k * D:(k + 1) * D]                   # (Np, D)
        hh = jnp.dot(alpha.astype(z_k.dtype), z_k,
                     preferred_element_type=jnp.float32)    # (TM, D)

        # ELU (alpha = 1).  exp(min(x,0)) - 1 == expm1(x) to within 1 ulp of 1 here;
        # expm1 itself is avoided to stay on guaranteed Mosaic lowering rules.
        hh = jnp.where(hh > 0, hh, jnp.exp(jnp.minimum(hh, 0.0)) - 1.0)
        outs.append(hh)

    res = outs[0] if G == 1 else jnp.concatenate(outs, axis=-1)
    out_ref[...] = res.astype(out_ref.dtype)                # one wide store per step


def custom_gat_layer(h, adj, w_fc, a_src, a_dst, *, residual=True,
                     tile_m=None, agg_dtype=jnp.float32):
    """Multi-head GAT layer forward (eval mode, 'sum' aggregator, 'cat' merge).

    h      : (N, in_dim)           node features
    adj    : (N, N)                adj[dst, src] != 0 iff edge src -> dst
    w_fc   : (H, in_dim, out_dim)  per-head fc weight (pre-transposed: z = h @ w_fc[h])
    a_src  : (H, 1, out_dim)       attn_fc weight half applied to source z
    a_dst  : (H, 1, out_dim)       attn_fc weight half applied to destination z
    Returns (N, H*out_dim).  agg_dtype=jnp.bfloat16 selects the bf16 MXU path for
    the aggregation matmul on v6e/v7x (softmax math stays f32).
    """
    N, in_dim = h.shape
    H, _, out_dim = w_fc.shape
    feat = H * out_dim
    assert adj.shape == (N, N)

    # ---- per-head projection + attention logits, once, in XLA (O(N*in_dim*out_dim),
    # negligible vs the O(N^2) message passing).  Both logit halves come out of one
    # matmul against concat(a_src, a_dst).
    z = jnp.einsum('ni,hio->hno', h, w_fc, precision=_HIGHEST)        # (H, N, D)
    a_cat = jnp.concatenate([a_src, a_dst], axis=1)                   # (H, 2, D)
    s = jnp.einsum('hno,hco->hcn', z, a_cat, precision=_HIGHEST)      # (H, 2, N)
    s_src, s_dst = s[:, 0, :], s[:, 1, :]                             # (H, N) each

    # ---- head grouping: smallest divisor G of H with G*out_dim % 128 == 0 keeps the
    # output block lane-dense; otherwise all heads per step (block = full feature axis).
    G = H
    for g in range(1, H + 1):
        if H % g == 0 and (g * out_dim) % 128 == 0:
            G = g
            break
    n_groups = H // G
    zbytes = jnp.dtype(agg_dtype).itemsize

    # ---- dst-row tile selection against a conservative VMEM budget (fits the v5e
    # 16 MiB scoped default and v7x's 64 MiB physical).  int8 adj => tile_m % 32 == 0.
    def _estimate(tm, npad):
        return (2 * tm * npad                        # adjacency slab (int8, double-buffered)
                + 2 * npad * G * out_dim * zbytes    # z slab for the head group
                + 8 * tm * npad * 4                  # softmax temporaries (f32)
                + 2 * tm * G * out_dim * 4           # output block
                + 2 * G * (npad + tm) * 4)           # attention logits

    if tile_m is None:
        budget = 20 * (1 << 20)
        tile_m = 32
        for cand in (512, 256, 128, 64, 32):
            if _estimate(cand, _round_up(N, cand)) <= budget:
                tile_m = cand
                break
    tile_m = max(32, _round_up(tile_m, 32))
    tile_m = min(tile_m, _round_up(N, 32))
    n_pad = _round_up(N, tile_m)
    n_tiles = n_pad // tile_m

    # ---- pad N (zero adjacency rows/cols => padded rows are fully masked => 0 output,
    # sliced off below), build kernel-side layouts.
    pad = n_pad - N
    adj_i8 = (adj > 0).astype(jnp.int8)
    if pad:
        adj_i8 = jnp.pad(adj_i8, ((0, pad), (0, pad)))
        z = jnp.pad(z, ((0, 0), (0, pad), (0, 0)))
        s_src = jnp.pad(s_src, ((0, 0), (0, pad)))
        s_dst = jnp.pad(s_dst, ((0, 0), (0, pad)))

    # head h occupies columns [h*out_dim, (h+1)*out_dim)  ==  torch.cat(head_outs, dim=1)
    zcat = jnp.transpose(z, (1, 0, 2)).reshape(n_pad, feat).astype(agg_dtype)
    ssrc = s_src[:, None, :]                                 # (H, 1, n_pad)
    sdst = s_dst[:, :, None]                                 # (H, n_pad, 1)

    vmem_limit = int(min(64 * (1 << 20),
                         max(32 * (1 << 20), 2 * _estimate(tile_m, n_pad))))

    cost = pl.CostEstimate(
        flops=2 * n_pad * n_pad * feat + 10 * H * n_pad * n_pad,
        transcendentals=H * n_pad * n_pad + n_pad * feat,
        bytes_accessed=(n_pad * n_pad                        # adj int8, reused across head groups
                        + n_tiles * n_pad * feat * zbytes    # z slab per dst tile
                        + n_pad * feat * 4                   # output
                        + 4 * H * n_pad * 4),                # attention logits
    )

    out = pl.pallas_call(
        gat_attention_kernel,
        out_shape=jax.ShapeDtypeStruct((n_pad, feat), jnp.float32),
        grid_spec=pltpu.PrefetchScalarGridSpec(
            num_scalar_prefetch=0,
            grid=(n_tiles, n_groups),          # dst tiles outer ("parallel"), head groups inner
            in_specs=[
                # adjacency slab: block index depends only on the tile -> fetched once
                # per dst tile and reused by every head group.
                pl.BlockSpec((tile_m, n_pad), lambda i, g: (i, 0)),
                pl.BlockSpec((n_pad, G * out_dim), lambda i, g: (0, g)),
                pl.BlockSpec((G, 1, n_pad), lambda i, g: (g, 0, 0)),
                pl.BlockSpec((G, tile_m, 1), lambda i, g: (g, i, 0)),
            ],
            out_specs=pl.BlockSpec((tile_m, G * out_dim), lambda i, g: (i, g)),
        ),
        compiler_params=pltpu.CompilerParams(
            dimension_semantics=("parallel", "arbitrary"),
            vmem_limit_bytes=vmem_limit),
        cost_estimate=cost,
    )(adj_i8, zcat, ssrc, sdst)

    out = out[:N]
    if residual and in_dim == feat:    # module disables residual unless in_dim == H*out_dim
        out = h + out
    return out


def gat_reference(h, adj, w_fc, a_src, a_dst, residual=True):
    """Plain-JAX reference mirroring the PyTorch forward (eval mode)."""
    N, in_dim = h.shape
    H, _, out_dim = w_fc.shape
    outs = []
    for hd in range(H):
        z = jnp.dot(h, w_fc[hd], precision=_HIGHEST)                      # (N, D)
        s_src = jnp.dot(z, a_src[hd, 0], precision=_HIGHEST)              # (N,)
        s_dst = jnp.dot(z, a_dst[hd, 0], precision=_HIGHEST)              # (N,)
        e = s_dst[:, None] + s_src[None, :]
        e = jnp.where(e > 0, e, 0.01 * e)
        e = jnp.where(adj > 0, e, -1e30)
        e = e - jnp.max(e, axis=-1, keepdims=True)
        p = jnp.where(adj > 0, jnp.exp(e), 0.0)
        alpha = p / jnp.sum(p, axis=-1, keepdims=True)
        hh = jnp.dot(alpha, z, precision=_HIGHEST)
        hh = jnp.where(hh > 0, hh, jnp.expm1(hh))
        outs.append(hh)
    out = jnp.concatenate(outs, axis=1)
    if residual and in_dim == H * out_dim:
        out = h + out
    return out


def _make_inputs(key, N, in_dim, out_dim, H):
    k_h, k_adj, k_wf, k_as, k_ad = jax.random.split(key, 5)
    h = jax.random.normal(k_h, (N, in_dim), dtype=jnp.float32)
    # Random directed graph + self-loops (every node has >= 1 incoming edge, as in
    # typical DGL usage, so the softmax is well-defined everywhere).
    adj = (jax.random.uniform(k_adj, (N, N)) < 0.25).astype(jnp.float32)
    adj = jnp.maximum(adj, jnp.eye(N, dtype=jnp.float32))
    w_fc = 0.1 * jax.random.normal(k_wf, (H, in_dim, out_dim), dtype=jnp.float32)
    a_src = 0.1 * jax.random.normal(k_as, (H, 1, out_dim), dtype=jnp.float32)
    a_dst = 0.1 * jax.random.normal(k_ad, (H, 1, out_dim), dtype=jnp.float32)
    return h, adj, w_fc, a_src, a_dst


if __name__ == "__main__":
    key = jax.random.PRNGKey(0)
    k_a, k_b = jax.random.split(key, 2)

    # Config A: lane-dense output path (out_dim multiple of 128), 2 dst tiles x
    # 2 head groups, residual active (in_dim == H * out_dim).
    N, in_dim, out_dim, H = 64, 256, 128, 2
    h, adj, w_fc, a_src, a_dst = _make_inputs(k_a, N, in_dim, out_dim, H)
    out_a = jax.block_until_ready(
        custom_gat_layer(h, adj, w_fc, a_src, a_dst, tile_m=32))
    ref_a = gat_reference(h, adj, w_fc, a_src, a_dst)
    assert out_a.shape == (N, H * out_dim)
    assert jnp.allclose(out_a, ref_a, atol=1e-2, rtol=1e-2), "config A mismatch"

    # Config B: small out_dim (all heads per grid step, full-width feature block) and
    # N = 48 exercises the padding path; residual active (16 == 2*8).
    N, in_dim, out_dim, H = 48, 16, 8, 2
    h_b, adj_b, w_fc_b, a_src_b, a_dst_b = _make_inputs(k_b, N, in_dim, out_dim, H)
    out_b = jax.block_until_ready(
        custom_gat_layer(h_b, adj_b, w_fc_b, a_src_b, a_dst_b, tile_m=32))
    ref_b = gat_reference(h_b, adj_b, w_fc_b, a_src_b, a_dst_b)
    assert out_b.shape == (N, H * out_dim)
    assert jnp.allclose(out_b, ref_b, atol=1e-2, rtol=1e-2), "config B mismatch"

    # Config C: bf16 aggregation-matmul path (v6e/v7x MXU fast path), looser tolerance.
    out_c = jax.block_until_ready(
        custom_gat_layer(h, adj, w_fc, a_src, a_dst, agg_dtype=jnp.bfloat16))
    assert jnp.allclose(out_c, ref_a, atol=5e-2, rtol=5e-2), "config C mismatch"

    print("KERNEL_OK")
</pallas_src>

<mosaic_0001>
module attributes {stable_mosaic.version = 11 : i64} {
  func.func @gat_attention_kernel(%arg0: i32, %arg1: i32, %arg2: memref<32x64xi8, #tpu.memory_space<vmem>>, %arg3: memref<64x128xf32, #tpu.memory_space<vmem>>, %arg4: memref<1x1x64xf32, #tpu.memory_space<vmem>>, %arg5: memref<1x32x1xf32, #tpu.memory_space<vmem>>, %arg6: memref<32x128xf32, #tpu.memory_space<vmem>>) attributes {dimension_semantics = [#tpu.dimension_semantics<parallel>, #tpu.dimension_semantics<arbitrary>], iteration_bounds = array<i64: 2, 2>, scalar_prefetch = 0 : i64, scratch_operands = 0 : i64, tpu.core_type = #tpu.core_type<tc>, window_params = [{transform_indices = @transform_0, window_bounds = array<i64: 32, 64>}, {transform_indices = @transform_1, window_bounds = array<i64: 64, 128>}, {transform_indices = @transform_2, window_bounds = array<i64: 1, 1, 64>}, {transform_indices = @transform_3, window_bounds = array<i64: 1, 32, 1>}, {transform_indices = @transform_4, window_bounds = array<i64: 32, 128>}]} {
    %c0 = arith.constant 0 : index
    %c0_0 = arith.constant 0 : index
    %0 = vector.load %arg2[%c0, %c0_0] : memref<32x64xi8, #tpu.memory_space<vmem>>, vector<32x64xi8>
    %1 = arith.sitofp %0 : vector<32x64xi8> to vector<32x64xf32>
    %cst = arith.constant 0.000000e+00 : f32
    %2 = vector.broadcast %cst : f32 to vector<32x64xf32>
    %3 = arith.cmpf ogt, %1, %2 : vector<32x64xf32>
    %c0_1 = arith.constant 0 : index
    %c0_2 = arith.constant 0 : index
    %c0_3 = arith.constant 0 : index
    %4 = vector.load %arg4[%c0_1, %c0_2, %c0_3] : memref<1x1x64xf32, #tpu.memory_space<vmem>>, vector<1x1x64xf32>
    %5 = vector.shape_cast %4 : vector<1x1x64xf32> to vector<1x64xf32>
    %c0_4 = arith.constant 0 : index
    %c0_5 = arith.constant 0 : index
    %c0_6 = arith.constant 0 : index
    %6 = vector.load %arg5[%c0_4, %c0_5, %c0_6] : memref<1x32x1xf32, #tpu.memory_space<vmem>>, vector<1x32x1xf32>
    %7 = vector.shape_cast %6 : vector<1x32x1xf32> to vector<32x1xf32>
    %8 = vector.broadcast %7 : vector<32x1xf32> to vector<32x64xf32>
    %9 = vector.broadcast %5 : vector<1x64xf32> to vector<32x64xf32>
    %10 = arith.addf %8, %9 : vector<32x64xf32>
    %cst_7 = arith.constant 0.000000e+00 : f32
    %11 = vector.broadcast %cst_7 : f32 to vector<32x64xf32>
    %12 = arith.cmpf ogt, %10, %11 : vector<32x64xf32>
    %cst_8 = arith.constant 0.00999999977 : f32
    %13 = vector.broadcast %cst_8 : f32 to vector<32x64xf32>
    %14 = arith.mulf %13, %10 : vector<32x64xf32>
    %15 = arith.select %12, %10, %14 : vector<32x64xi1>, vector<32x64xf32>
    %cst_9 = arith.constant -1.000000e+30 : f32
    %16 = vector.broadcast %cst_9 : f32 to vector<32x64xf32>
    %17 = arith.select %3, %15, %16 : vector<32x64xi1>, vector<32x64xf32>
    %cst_10 = arith.constant dense<0xFF800000> : vector<32xf32>
    %18 = vector.multi_reduction <maximumf>, %17, %cst_10 [1] : vector<32x64xf32> to vector<32xf32>
    %19 = vector.shape_cast %18 : vector<32xf32> to vector<32x1xf32>
    %cst_11 = arith.constant -1.000000e+29 : f32
    %20 = vector.broadcast %cst_11 : f32 to vector<32x1xf32>
    %21 = arith.maximumf %19, %20 : vector<32x1xf32>
    %22 = vector.broadcast %21 : vector<32x1xf32> to vector<32x64xf32>
    %23 = arith.subf %17, %22 : vector<32x64xf32>
    %24 = math.exp %23 : vector<32x64xf32>
    %cst_12 = arith.constant dense<0.000000e+00> : vector<32xf32>
    %25 = vector.multi_reduction <add>, %24, %cst_12 [1] : vector<32x64xf32> to vector<32xf32>
    %26 = vector.shape_cast %25 : vector<32xf32> to vector<32x1xf32>
    %cst_13 = arith.constant 1.000000e-30 : f32
    %27 = vector.broadcast %cst_13 : f32 to vector<32x1xf32>
    %28 = arith.maximumf %26, %27 : vector<32x1xf32>
    %29 = tpu.reciprocal %28 {approx = true} : vector<32x1xf32> -> vector<32x1xf32>
    %30 = vector.broadcast %29 : vector<32x1xf32> to vector<32x64xf32>
    %31 = arith.mulf %24, %30 : vector<32x64xf32>
    %c0_14 = arith.constant 0 : index
    %c0_15 = arith.constant 0 : index
    %32 = vector.load %arg3[%c0_14, %c0_15] : memref<64x128xf32, #tpu.memory_space<vmem>>, vector<64x128xf32>
    %cst_16 = arith.constant dense<0.000000e+00> : vector<32x128xf32>
    %33 = tpu.matmul %31, %32, %cst_16 {dimension_numbers = #tpu.dot_dimension_numbers<[1], [0], [0], [1], [0, 0, 1, 1], [], []>} : vector<32x64xf32>, vector<64x128xf32>, vector<32x128xf32> -> vector<32x128xf32>
    %cst_17 = arith.constant 0.000000e+00 : f32
    %34 = vector.broadcast %cst_17 : f32 to vector<32x128xf32>
    %35 = arith.cmpf ogt, %33, %34 : vector<32x128xf32>
    %cst_18 = arith.constant 0.000000e+00 : f32
    %36 = vector.broadcast %cst_18 : f32 to vector<32x128xf32>
    %37 = arith.minimumf %33, %36 : vector<32x128xf32>
    %38 = math.exp %37 : vector<32x128xf32>
    %cst_19 = arith.constant 1.000000e+00 : f32
    %39 = vector.broadcast %cst_19 : f32 to vector<32x128xf32>
    %40 = arith.subf %38, %39 : vector<32x128xf32>
    %41 = arith.select %35, %33, %40 : vector<32x128xi1>, vector<32x128xf32>
    %c0_20 = arith.constant 0 : index
    %c0_21 = arith.constant 0 : index
    %42 = vector.load %arg6[%c0_20, %c0_21] : memref<32x128xf32, #tpu.memory_space<vmem>>, vector<32x128xf32>
    tpu.vector_store %arg6[%c0_20, %c0_21], %41 {strides = array<i32>} : memref<32x128xf32, #tpu.memory_space<vmem>>, vector<32x128xf32>,
    return
  }
  func.func @transform_0(%arg0: i32, %arg1: i32) -> (i32, i32) {
    %c0_i32 = arith.constant 0 : i32
    %c0_i32_0 = arith.constant 0 : i32
    return %arg0, %c0_i32 : i32, i32
  }
  func.func @transform_1(%arg0: i32, %arg1: i32) -> (i32, i32) {
    %c0_i32 = arith.constant 0 : i32
    %c0_i32_0 = arith.constant 0 : i32
    return %c0_i32, %arg1 : i32, i32
  }
  func.func @transform_2(%arg0: i32, %arg1: i32) -> (i32, i32, i32) {
    %c0_i32 = arith.constant 0 : i32
    %c0_i32_0 = arith.constant 0 : i32
    %c0_i32_1 = arith.constant 0 : i32
    return %arg1, %c0_i32, %c0_i32_0 : i32, i32, i32
  }
  func.func @transform_3(%arg0: i32, %arg1: i32) -> (i32, i32, i32) {
    %c0_i32 = arith.constant 0 : i32
    %c0_i32_0 = arith.constant 0 : i32
    return %arg1, %arg0, %c0_i32 : i32, i32, i32
  }
  func.func @transform_4(%arg0: i32, %arg1: i32) -> (i32, i32) {
    %c0_i32 = arith.constant 0 : i32
    return %arg0, %arg1 : i32, i32
  }
}

</mosaic_0001>

<llo_original>
// kernel: tpu_custom_call.1
$region0: #{tpu_custom_call.1}
  #allocation0 [shape = 'u32[]', space=smem, size = 0x4, offset = 0x4, fixed_abs, tag = 'smem constant byte address 0x4 - core index']
  #allocation1 [shape = 'u32[144,128]{1,0:T(1,128)}', space=vmem, size = 0x12000, scoped, tag = 'internal scratch']
  %s0 = inlined_call_operand.hbm [shape: s8[64,64], index: 0, kind: input, shape index: {}]
  %s1 = inlined_call_operand.vmem [shape: f32[64,256], index: 1, kind: input, shape index: {}]
  %s2 = inlined_call_operand.vmem [shape: f32[2,1,64], index: 2, kind: input, shape index: {}]
  %s3 = inlined_call_operand.vmem [shape: f32[2,64,1], index: 3, kind: input, shape index: {}]
  %s4 = inlined_call_operand.hbm [shape: f32[64,256], index: 4, kind: output, shape index: {}]
  %s5 = sld [smem:[#allocation0]]
  $region91: #{tpu_custom_call.1} parent=0
    _
  %s7 = ssub.s32 1, %s5
  %s8 = scalar_select 0, %s7, %s5
  $region1: #{tpu_custom_call.1} parent=0
    #allocation2 [shape = 'u8[8192]{0}', space=vmem, size = 0x2000, scoped, tag = 'input window, operand 0']
    #allocation3 [shape = 's32[2]{0}', space=sflag, size = 0x8, scoped, tag = 'scoped memory for tpu_custom_call.1']
    #allocation4 [shape = 's32[2]{0}', space=sflag, size = 0x8, scoped, tag = 'scoped memory for tpu_custom_call.1']
    #allocation5 [shape = 'u8[65536]{0}', space=vmem, size = 0x10000, scoped, tag = 'input window, operand 1']
    #allocation6 [shape = 'u8[32768]{0}', space=vmem, size = 0x8000, scoped, tag = 'output window, operand 0']
    %9 = vsyncpa [#allocation3], 0
    %s10 = scalar_lea.sflag [#allocation3], 1
    %11 = vsyncpa %s10, 0
    %12 = vsyncpa [#allocation4], 0
    %s13 = scalar_lea.sflag [#allocation4], 1
    %14 = vsyncpa %s13, 0
    loop: start=0, step=1, limit=6
    $region2: #{tpu_custom_call.1} parent=1 // loop_pre_header
      _
    $region3: #{tpu_custom_call.1} parent=1 // loop_header
      %s16 = sphi 0, %s20
      %p17 = scmp.ge.s32.totalorder %s16, 6
      %s23 = sphi 0, %s35
      %s24 = sphi 0, %s31
      %s25 = sphi 0, %s23
      %s26 = sphi 0, %s24
      %s27 = sphi 0, %s25
      %s28 = sphi 0, %s26
      %s38 = sphi 0, %s40
      %s41 = sphi 0, %s38
      %s42 = sphi 0, %s41
      %s58 = sphi 0, %s42
      %s64 = sphi 0, %s66
      %s67 = sphi 0, %s64
      %s68 = sphi 0, %s67
      %s84 = sphi 0, %s68
      %s90 = sphi 0, %s92
      %s93 = sphi 0, %s90
      %s94 = sphi 0, %s93
      %s110 = sphi 0, %s94
      %s118 = sphi 0, %s120
      %s121 = sphi 0, %s118
      %s122 = sphi 0, %s121
      %s138 = sphi 0, %s122
      %s146 = sphi 0, %s148
      %s149 = sphi 0, %s146
      %s150 = sphi 0, %s149
      %s166 = sphi 0, %s150
    $region4: #{tpu_custom_call.1} parent=1 // loop_header_branch
      %19 = sbr.rel (%p17) target = $region8
    $region5: #{tpu_custom_call.1} parent=1 // loop_body
      %s21 = ssub.s32 %s16, 1
      %s22 = ssub.s32 %s16, 2
      %s29 = sadd.s32 1, %s24
      %p30 = scmp.ge.s32.totalorder %s29, 2
      %s31 = scalar_select %p30, 0, %s29
      %s32 = sadd.s32 1, %s23
      %s33 = scalar_select %p30, %s32, %s23
      %p34 = scmp.ge.s32.totalorder %s33, 2
      %s35 = scalar_select %p34, 0, %s33
      %s36 = ssub.s32 %s23, %s35
      %p37 = scmp.eq.s32.totalorder %s36, 0
      %s39 = sadd.s32 %s38, 1
      %s40 = scalar_select %p37, %s38, %s39
      %p43 = pneg %p37
      %p44 = scmp.eq.s32.totalorder %s16, 3
      %p45 = por %p43, %p44
      %p46 = scmp.ne.s32.totalorder %s38, %s41
      %p47 = scmp.eq.s32.totalorder %s16, 0
      %p48 = por %p46, %p47
      %p49 = scmp.ne.s32.totalorder %s38, %s41
      %p50 = scmp.eq.s32.totalorder %s21, 3
      %p51 = por %p49, %p50
      %p52 = scmp.ne.s32.totalorder %s41, %s42
      %p53 = scmp.eq.s32.totalorder %s21, 0
      %p54 = por %p52, %p53
      %p55 = scmp.ne.s32.totalorder %s41, %s42
      %p56 = scmp.eq.s32.totalorder %s22, 3
      %p57 = por %p55, %p56
      %p59 = scmp.ne.s32.totalorder %s42, %s58
      %p60 = scmp.eq.s32.totalorder %s22, 0
      %p61 = por %p59, %p60
      %s62 = ssub.s32 %s24, %s31
      %p63 = scmp.eq.s32.totalorder %s62, 0
      %s65 = sadd.s32 %s64, 1
      %s66 = scalar_select %p63, %s64, %s65
      %p69 = pneg %p63
      %p70 = scmp.eq.s32.totalorder %s16, 3
      %p71 = por %p69, %p70
      %p72 = scmp.ne.s32.totalorder %s64, %s67
      %p73 = scmp.eq.s32.totalorder %s16, 0
      %p74 = por %p72, %p73
      %p75 = scmp.ne.s32.totalorder %s64, %s67
      %p76 = scmp.eq.s32.totalorder %s21, 3
      %p77 = por %p75, %p76
      %p78 = scmp.ne.s32.totalorder %s67, %s68
      %p79 = scmp.eq.s32.totalorder %s21, 0
      %p80 = por %p78, %p79
      %p81 = scmp.ne.s32.totalorder %s67, %s68
      %p82 = scmp.eq.s32.totalorder %s22, 3
      %p83 = por %p81, %p82
      %p85 = scmp.ne.s32.totalorder %s68, %s84
      %p86 = scmp.eq.s32.totalorder %s22, 0
      %p87 = por %p85, %p86
      %s88 = ssub.s32 %s24, %s31
      %p89 = scmp.eq.s32.totalorder %s88, 0
      %s91 = sadd.s32 %s90, 1
      %s92 = scalar_select %p89, %s90, %s91
      %p95 = pneg %p89
      %p96 = scmp.eq.s32.totalorder %s16, 3
      %p97 = por %p95, %p96
      %p98 = scmp.ne.s32.totalorder %s90, %s93
      %p99 = scmp.eq.s32.totalorder %s16, 0
      %p100 = por %p98, %p99
      %p101 = scmp.ne.s32.totalorder %s90, %s93
      %p102 = scmp.eq.s32.totalorder %s21, 3
      %p103 = por %p101, %p102
      %p104 = scmp.ne.s32.totalorder %s93, %s94
      %p105 = scmp.eq.s32.totalorder %s21, 0
      %p106 = por %p104, %p105
      %p107 = scmp.ne.s32.totalorder %s93, %s94
      %p108 = scmp.eq.s32.totalorder %s22, 3
      %p109 = por %p107, %p108
      %p111 = scmp.ne.s32.totalorder %s94, %s110
      %p112 = scmp.eq.s32.totalorder %s22, 0
      %p113 = por %p111, %p112
      %s114 = ssub.s32 %s24, %s31
      %s115 = ssub.s32 %s23, %s35
      %s116 = sor.u32 %s114, %s115
      %p117 = scmp.eq.s32.totalorder %s116, 0
      %s119 = sadd.s32 %s118, 1
      %s120 = scalar_select %p117, %s118, %s119
      %p123 = pneg %p117
      %p124 = scmp.eq.s32.totalorder %s16, 3
      %p125 = por %p123, %p124
      %p126 = scmp.ne.s32.totalorder %s118, %s121
      %p127 = scmp.eq.s32.totalorder %s16, 0
      %p128 = por %p126, %p127
      %p129 = scmp.ne.s32.totalorder %s118, %s121
      %p130 = scmp.eq.s32.totalorder %s21, 3
      %p131 = por %p129, %p130
      %p132 = scmp.ne.s32.totalorder %s121, %s122
      %p133 = scmp.eq.s32.totalorder %s21, 0
      %p134 = por %p132, %p133
      %p135 = scmp.ne.s32.totalorder %s121, %s122
      %p136 = scmp.eq.s32.totalorder %s22, 3
      %p137 = por %p135, %p136
      %p139 = scmp.ne.s32.totalorder %s122, %s138
      %p140 = scmp.eq.s32.totalorder %s22, 0
      %p141 = por %p139, %p140
      %s142 = ssub.s32 %s23, %s35
      %s143 = ssub.s32 %s24, %s31
      %s144 = sor.u32 %s142, %s143
      %p145 = scmp.eq.s32.totalorder %s144, 0
      %s147 = sadd.s32 %s146, 1
      %s148 = scalar_select %p145, %s146, %s147
      %p151 = pneg %p145
      %p152 = scmp.eq.s32.totalorder %s16, 3
      %p153 = por %p151, %p152
      %p154 = scmp.ne.s32.totalorder %s146, %s149
      %p155 = scmp.eq.s32.totalorder %s16, 0
      %p156 = por %p154, %p155
      %p157 = scmp.ne.s32.totalorder %s146, %s149
      %p158 = scmp.eq.s32.totalorder %s21, 3
      %p159 = por %p157, %p158
      %p160 = scmp.ne.s32.totalorder %s149, %s150
      %p161 = scmp.eq.s32.totalorder %s21, 0
      %p162 = por %p160, %p161
      %p163 = scmp.ne.s32.totalorder %s149, %s150
      %p164 = scmp.eq.s32.totalorder %s22, 3
      %p165 = por %p163, %p164
      %p167 = scmp.ne.s32.totalorder %s150, %s166
      %p168 = scmp.eq.s32.totalorder %s22, 0
      %p169 = por %p167, %p168
      %p170 = scmp.le.s32.totalorder 1, %s16
      %p171 = scmp.lt.s32.totalorder %s16, 5
      %p172 = pnand %p170, %p171
      %p173 = pneg %p172
      // Predicated region
      $region9: #{tpu_custom_call.1} parent=5 // pred_check
        _
      $region10: #{tpu_custom_call.1} parent=5 // pred_check_branch
        %175 = sbr.rel (%p172) target = $region12
      $region11: #{tpu_custom_call.1} parent=5 // pred_region
        %s176 = ssub.s32 %s16, 1
      $region12: #{tpu_custom_call.1} parent=5 // pred_fallthru
        _
      %p177 = scmp.lt.s32.totalorder %s16, 4
      // Predicated region
      $region13: #{tpu_custom_call.1} parent=5 // pred_check
        %p178 = pneg %p177
      $region14: #{tpu_custom_call.1} parent=5 // pred_check_branch
        %180 = sbr.rel (%p178) target = $region16
      $region15: #{tpu_custom_call.1} parent=5 // pred_region
        // Predicated region
        $region17: #{tpu_custom_call.1} parent=15 // pred_check
          %p181 = pneg %p48
        $region18: #{tpu_custom_call.1} parent=15 // pred_check_branch
          %183 = sbr.rel (%p181) target = $region20
        $region19: #{tpu_custom_call.1} parent=15 // pred_region
          %s184 = sand.u32 %s38, 1
          %s185 = scalar_lea.sflag [#allocation3], %s184
          %s186 = sand.u32 %s38, 1
          %s187 = smul.addr %s186, 8
          %s188 = scalar_lea.vmem [#allocation2], %s187
          %s190 = ssub.s32 128, 128
          %191 = vsyncadd %s185, %s190
          %s192 = smul.addr %s23, 128
          %s193 = scalar_lea.hbm %s0, %s192
          %s195 = sshll.u32 %s188, 4
          %s196 = int_to_ptr.vmem [resolvable:$true] %s195
          %198 = dma.hbm_to_vmem [thread:$0]  %s193, 128, %s196, %s185
        $region20: #{tpu_custom_call.1} parent=15 // pred_fallthru
          _
        // Predicated region
        $region21: #{tpu_custom_call.1} parent=15 // pred_check
          %p199 = pneg %p74
        $region22: #{tpu_custom_call.1} parent=15 // pred_check_branch
          %201 = sbr.rel (%p199) target = $region24
        $region23: #{tpu_custom_call.1} parent=15 // pred_region
          %s202 = sand.u32 %s64, 1
          %s203 = sand.u32 %s64, 1
          %s204 = smul.addr %s203, 64
          %s205 = scalar_lea.vmem [#allocation5], %s204
          %s206 = smul.addr %s24, 8
          %s207 = scalar_lea.vmem %s1, %s206
          // Predicated region
          $region25: #{tpu_custom_call.1} parent=23 // pred_check
            _
          $region26: #{tpu_custom_call.1} parent=23 // pred_check_branch
            %209 = sbr.rel (0) target = $region28
          $region27: #{tpu_custom_call.1} parent=23 // pred_region
            // Predicated region
            $region29: #{tpu_custom_call.1} parent=27 // pred_check
              _
            $region30: #{tpu_custom_call.1} parent=27 // pred_check_branch
              %211 = sbr.rel (0) target = $region32
            $region31: #{tpu_custom_call.1} parent=27 // pred_region
              // Predicated region
              $region44: #{tpu_custom_call.1} parent=31 // pred_check
                _
              $region45: #{tpu_custom_call.1} parent=31 // pred_check_branch
                %240 = sbr.rel (0) target = $region47
              $region46: #{tpu_custom_call.1} parent=31 // pred_region
                loop: start=0, step=1, limit=1
                $region48: #{tpu_custom_call.1} parent=46 // loop_pre_header
                  _
                $region49: #{tpu_custom_call.1} parent=46 // loop_header
                  %s242 = sphi 0, %s246
                  %p243 = scmp.ge.s32.totalorder %s242, 1
                  %s247 = sphi %s207, %s207
                  %s248 = sphi %s205, %s205
                $region50: #{tpu_custom_call.1} parent=46 // loop_header_branch
                  %245 = sbr.rel (%p243) target = $region54
                $region51: #{tpu_custom_call.1} parent=46 // loop_body
                  %v249 = vld [vmem:[%s247] sm:$0xff]
                  %250 = vst [vmem:[%s248] sm:$0xff] %v249
                  %v251 = vld [vmem:[%s247 + $0x10] sm:$0xff]
                  %252 = vst [vmem:[%s248 + $0x8] sm:$0xff] %v251
                  %v253 = vld [vmem:[%s247 + $0x20] sm:$0xff]
                  %254 = vst [vmem:[%s248 + $0x10] sm:$0xff] %v253
                  %v255 = vld [vmem:[%s247 + $0x30] sm:$0xff]
                  %256 = vst [vmem:[%s248 + $0x18] sm:$0xff] %v255
                  %v257 = vld [vmem:[%s247 + $0x40] sm:$0xff]
                  %258 = vst [vmem:[%s248 + $0x20] sm:$0xff] %v257
                  %v259 = vld [vmem:[%s247 + $0x50] sm:$0xff]
                  %260 = vst [vmem:[%s248 + $0x28] sm:$0xff] %v259
                  %v261 = vld [vmem:[%s247 + $0x60] sm:$0xff]
                  %262 = vst [vmem:[%s248 + $0x30] sm:$0xff] %v261
                  %v263 = vld [vmem:[%s247 + $0x70] sm:$0xff]
                  %264 = vst [vmem:[%s248 + $0x38] sm:$0xff] %v263
                $region52: #{tpu_custom_call.1} parent=46 // loop_footer
                  %s246 = sadd.s32 1, %s242
                $region53: #{tpu_custom_call.1} parent=46 // loop_footer_branch
                  %241 = sbr.rel target = $region49
                $region54: #{tpu_custom_call.1} parent=46 // loop_exit
                  _
              $region47: #{tpu_custom_call.1} parent=31 // pred_fallthru
                _
              // Predicated region
              $region55: #{tpu_custom_call.1} parent=31 // pred_check
                _
              $region56: #{tpu_custom_call.1} parent=31 // pred_check_branch
                %266 = sbr.rel target = $region58
              $region57: #{tpu_custom_call.1} parent=31 // pred_region
                _
              $region58: #{tpu_custom_call.1} parent=31 // pred_fallthru
                _
            $region32: #{tpu_custom_call.1} parent=27 // pred_fallthru
              _
            // Predicated region
            $region33: #{tpu_custom_call.1} parent=27 // pred_check
              _
            $region34: #{tpu_custom_call.1} parent=27 // pred_check_branch
              %213 = sbr.rel target = $region36
            $region35: #{tpu_custom_call.1} parent=27 // pred_region
              loop: start=0, step=1, limit=1
              $region37: #{tpu_custom_call.1} parent=35 // loop_pre_header
                _
              $region38: #{tpu_custom_call.1} parent=35 // loop_header
                %s216 = sphi 0, %s220
                %p217 = scmp.ge.s32.totalorder %s216, 1
                %s221 = sphi %s207, %s207
                %s222 = sphi %s205, %s205
              $region39: #{tpu_custom_call.1} parent=35 // loop_header_branch
                %219 = sbr.rel (%p217) target = $region43
              $region40: #{tpu_custom_call.1} parent=35 // loop_body
                %v223 = vld [vmem:[%s221] sm:$0xff]
                %224 = vst [vmem:[%s222] sm:$0xff] %v223
                %v225 = vld [vmem:[%s221 + $0x10] sm:$0xff]
                %226 = vst [vmem:[%s222 + $0x8] sm:$0xff] %v225
                %v227 = vld [vmem:[%s221 + $0x20] sm:$0xff]
                %228 = vst [vmem:[%s222 + $0x10] sm:$0xff] %v227
                %v229 = vld [vmem:[%s221 + $0x30] sm:$0xff]
                %230 = vst [vmem:[%s222 + $0x18] sm:$0xff] %v229
                %v231 = vld [vmem:[%s221 + $0x40] sm:$0xff]
                %232 = vst [vmem:[%s222 + $0x20] sm:$0xff] %v231
                %v233 = vld [vmem:[%s221 + $0x50] sm:$0xff]
                %234 = vst [vmem:[%s222 + $0x28] sm:$0xff] %v233
                %v235 = vld [vmem:[%s221 + $0x60] sm:$0xff]
                %236 = vst [vmem:[%s222 + $0x30] sm:$0xff] %v235
                %v237 = vld [vmem:[%s221 + $0x70] sm:$0xff]
                %238 = vst [vmem:[%s222 + $0x38] sm:$0xff] %v237
              $region41: #{tpu_custom_call.1} parent=35 // loop_footer
                %s220 = sadd.s32 1, %s216
              $region42: #{tpu_custom_call.1} parent=35 // loop_footer_branch
                %215 = sbr.rel target = $region38
              $region43: #{tpu_custom_call.1} parent=35 // loop_exit
                _
            $region36: #{tpu_custom_call.1} parent=27 // pred_fallthru
              _
          $region28: #{tpu_custom_call.1} parent=23 // pred_fallthru
            _
          %267 = vnop
        $region24: #{tpu_custom_call.1} parent=15 // pred_fallthru
          _
        // Predicated region
        $region59: #{tpu_custom_call.1} parent=15 // pred_check
          %p268 = pneg %p100
        $region60: #{tpu_custom_call.1} parent=15 // pred_check_branch
          %270 = sbr.rel (%p268) target = $region62
        $region61: #{tpu_custom_call.1} parent=15 // pred_region
          %p271 = scmp.lt.s32.totalorder %s24, 1
          %s272 = scalar_select %p271, %s24, 1
          %s273 = scalar_lea.vmem %s2, %s272
        $region62: #{tpu_custom_call.1} parent=15 // pred_fallthru
          _
        // Predicated region
        $region63: #{tpu_custom_call.1} parent=15 // pred_check
          %p274 = pneg %p128
        $region64: #{tpu_custom_call.1} parent=15 // pred_check_branch
          %276 = sbr.rel (%p274) target = $region66
        $region65: #{tpu_custom_call.1} parent=15 // pred_region
          %s277 = smul.u32 4, %s23
          %p278 = scmp.lt.s32.totalorder %s24, 1
          %s279 = scalar_select %p278, %s24, 1
          %p280 = scmp.lt.s32.totalorder %s277, 7
          %s281 = scalar_select %p280, %s277, 7
          %s282 = smul.addr %s279, 8
          %s283 = sadd.s32 %s281, %s282
          %s284 = smul.addr %s283, 8
          %s285 = scalar_lea.vmem %s3, %s284
          %s286 = smul.u32 4, %s23
        $region66: #{tpu_custom_call.1} parent=15 // pred_fallthru
          _
      $region16: #{tpu_custom_call.1} parent=5 // pred_fallthru
        _
      %p287 = scmp.le.s32.totalorder 1, %s16
      %p288 = scmp.lt.s32.totalorder %s16, 5
      %p289 = pnand %p287, %p288
      %p290 = pneg %p289
      // Predicated region
      $region67: #{tpu_custom_call.1} parent=5 // pred_check
        _
      $region68: #{tpu_custom_call.1} parent=5 // pred_check_branch
        %292 = sbr.rel (%p289) target = $region70
      $region69: #{tpu_custom_call.1} parent=5 // pred_region
        %s293 = ssub.s32 %s16, 1
        %s294 = sand.u32 %s41, 1
        %s295 = scalar_lea.sflag [#allocation3], %s294
        %s296 = sand.u32 %s41, 1
        %s297 = smul.addr %s296, 8
        %s298 = scalar_lea.vmem [#allocation2], %s297
        // Predicated region
        $region71: #{tpu_custom_call.1} parent=69 // pred_check
          %p299 = pneg %p54
        $region72: #{tpu_custom_call.1} parent=69 // pred_check_branch
          %301 = sbr.rel (%p299) target = $region74
        $region73: #{tpu_custom_call.1} parent=69 // pred_region
          %302 = dma.done %s295, 128
        $region74: #{tpu_custom_call.1} parent=69 // pred_fallthru
          _
        %s303 = sand.u32 %s67, 1
        %s304 = sand.u32 %s67, 1
        %s305 = smul.addr %s304, 64
        %s306 = scalar_lea.vmem [#allocation5], %s305
        // Predicated region
        $region75: #{tpu_custom_call.1} parent=69 // pred_check
          %p307 = pneg %p80
        $region76: #{tpu_custom_call.1} parent=69 // pred_check_branch
          %309 = sbr.rel (%p307) target = $region78
        $region77: #{tpu_custom_call.1} parent=69 // pred_region
          _
        $region78: #{tpu_custom_call.1} parent=69 // pred_fallthru
          _
        %s310 = sand.u32 %s41, 1
        %s311 = scalar_lea.sflag [#allocation3], %s310
        %s312 = sand.u32 %s41, 1
        %s313 = smul.addr %s312, 8
        %s314 = scalar_lea.vmem [#allocation2], %s313
        %p315 = pneg %p54
        %p316 = pneg %p51
        %s317 = sand.u32 %s67, 1
        %s318 = sand.u32 %s67, 1
        %s319 = smul.addr %s318, 64
        %s320 = scalar_lea.vmem [#allocation5], %s319
        %p321 = pneg %p80
        %p322 = pneg %p77
        %p323 = scmp.lt.s32.totalorder %s26, 1
        %s324 = scalar_select %p323, %s26, 1
        %s325 = scalar_lea.vmem %s2, %s324
        %p326 = pneg %p106
        %p327 = pneg %p103
        %s328 = smul.u32 4, %s25
        %p329 = scmp.lt.s32.totalorder %s26, 1
        %s330 = scalar_select %p329, %s26, 1
        %p331 = scmp.lt.s32.totalorder %s328, 7
        %s332 = scalar_select %p331, %s328, 7
        %s333 = smul.addr %s330, 8
        %s334 = sadd.s32 %s332, %s333
        %s335 = smul.addr %s334, 8
        %s336 = scalar_lea.vmem %s3, %s335
        %p337 = pneg %p134
        %p338 = pneg %p131
        %p339 = pneg %p162
        %p340 = pneg %p159
        %s341 = sand.u32 %s149, 1
        %s342 = scalar_lea.sflag [#allocation4], %s341
        %s343 = sand.u32 %s149, 1
        %s344 = smul.addr %s343, 32
        %s345 = scalar_lea.vmem [#allocation6], %s344
        %p346 = scmp.lt.s32.totalorder %s26, 1
        %s347 = scalar_select %p346, %s26, 1
        %s348 = scalar_lea.vmem %s2, %s347
        %s349 = smul.u32 4, %s25
        %p350 = scmp.lt.s32.totalorder %s26, 1
        %s351 = scalar_select %p350, %s26, 1
        %p352 = scmp.lt.s32.totalorder %s349, 7
        %s353 = scalar_select %p352, %s349, 7
        %s354 = smul.addr %s351, 8
        %s355 = sadd.s32 %s353, %s354
        %s356 = smul.addr %s355, 8
        %s357 = scalar_lea.vmem %s3, %s356
        %s358 = smul.u32 4, %s25
        %s359 = smul.u32 4, %s25
        %v360 = vld [vmem:[%s298] sm:$0xff]
        %v361 = vunpack.c.0.s8 %v360
        %v362 = vunpack.c.1.s8 %v360
        %v363 = vunpack.c.2.s8 %v360
        %v364 = vunpack.c.3.s8 %v360
        %v365 = vcvt.s32.f32 %v361
        %v366 = vcvt.s32.f32 %v362
        %v367 = vcvt.s32.f32 %v363
        %v368 = vcvt.s32.f32 %v364
        %vm369 = vcmp.gt.f32.partialorder %v365, 0.0
        %vm370 = vcmp.gt.f32.partialorder %v366, 0.0
        %vm371 = vcmp.gt.f32.partialorder %v367, 0.0
        %vm372 = vcmp.gt.f32.partialorder %v368, 0.0
        %v373 = vld [vmem:[%s348] sm:$0x1]
        %v374 = vld [vmem:[%s357] sm:$0xff]
        %v375 = vld [vmem:[%s357 + $0x8] sm:$0xff]
        %v376 = vld [vmem:[%s357 + $0x10] sm:$0xff]
        %v377 = vld [vmem:[%s357 + $0x18] sm:$0xff]
        %379 = vset.pattern.permute.xlu0 0
        %380 = vperm.xlu0 %379, %v374
        %v381 = vpop.permute.xlu0 %380
        %384 = vset.pattern.permute.xlu0 0
        %385 = vperm.xlu0 %384, %v375
        %v386 = vpop.permute.xlu0 %385
        %389 = vset.pattern.permute.xlu0 0
        %390 = vperm.xlu0 %389, %v376
        %v391 = vpop.permute.xlu0 %390
        %394 = vset.pattern.permute.xlu0 0
        %395 = vperm.xlu0 %394, %v377
        %v396 = vpop.permute.xlu0 %395
        %v399 = vlaneseq
        %v400 = vshrl.u32 %v399, 7
        %v401 = vsub.s32 0, %v400
        %v402 = vrot.slane %v373, %v401
        %v404 = vadd.f32 %v381, %v402
        %v405 = vadd.f32 %v386, %v402
        %v406 = vadd.f32 %v391, %v402
        %v407 = vadd.f32 %v396, %v402
        %vm408 = vcmp.gt.f32.partialorder %v404, 0.0
        %vm409 = vcmp.gt.f32.partialorder %v405, 0.0
        %vm410 = vcmp.gt.f32.partialorder %v406, 0.0
        %vm411 = vcmp.gt.f32.partialorder %v407, 0.0
        %v412 = vmul.f32 %v404, 0.01
        %v413 = vmul.f32 %v405, 0.01
        %v414 = vmul.f32 %v406, 0.01
        %v415 = vmul.f32 %v407, 0.01
        %v416 = vsel %vm408, %v404, %v412
        %v417 = vsel %vm409, %v405, %v413
        %v418 = vsel %vm410, %v406, %v414
        %v419 = vsel %vm411, %v407, %v415
        %v420 = vsel %vm369, %v416, -1e+30
        %v421 = vsel %vm370, %v417, -1e+30
        %v422 = vsel %vm371, %v418, -1e+30
        %v423 = vsel %vm372, %v419, -1e+30
        %vm424 = vcmask 523264
        %v425 = vsel %vm424, %v420, -inf
        %426 = vmax.xlane.f32.xlu0 %v425
        %v427 = vpop.xlane.xlu0 %426
        %v428 = vsel %vm424, %v421, -inf
        %429 = vmax.xlane.f32.xlu0 %v428
        %v430 = vpop.xlane.xlu0 %429
        %v431 = vsel %vm424, %v422, -inf
        %432 = vmax.xlane.f32.xlu0 %v431
        %v433 = vpop.xlane.xlu0 %432
        %v434 = vsel %vm424, %v423, -inf
        %435 = vmax.xlane.f32.xlu0 %v434
        %v436 = vpop.xlane.xlu0 %435
        %v437 = vmax.f32 %v427, -1e+29
        %v438 = vmax.f32 %v430, -1e+29
        %v439 = vmax.f32 %v433, -1e+29
        %v440 = vmax.f32 %v436, -1e+29
        %v441 = vsub.f32 %v420, %v437
        %v442 = vsub.f32 %v421, %v438
        %v443 = vsub.f32 %v422, %v439
        %v444 = vsub.f32 %v423, %v440
        %v445 = vmul.f32 %v441, 1.442695
        %v446 = vpow.pop %v445
        %v447 = vmul.f32 %v442, 1.442695
        %v448 = vpow.pop %v447
        %v449 = vmul.f32 %v443, 1.442695
        %v450 = vpow.pop %v449
        %v451 = vmul.f32 %v444, 1.442695
        %v452 = vpow.pop %v451
        %v453 = vsel %vm424, %v446, 0.0
        %454 = vadd.xlane.f32.xlu0 %v453
        %v455 = vpop.xlane.xlu0 %454
        %v456 = vsel %vm424, %v448, 0.0
        %457 = vadd.xlane.f32.xlu0 %v456
        %v458 = vpop.xlane.xlu0 %457
        %v459 = vsel %vm424, %v450, 0.0
        %460 = vadd.xlane.f32.xlu0 %v459
        %v461 = vpop.xlane.xlu0 %460
        %v462 = vsel %vm424, %v452, 0.0
        %463 = vadd.xlane.f32.xlu0 %v462
        %v464 = vpop.xlane.xlu0 %463
        %v465 = vmax.f32 %v455, 1e-30
        %v466 = vmax.f32 %v458, 1e-30
        %v467 = vmax.f32 %v461, 1e-30
        %v468 = vmax.f32 %v464, 1e-30
        %v469 = vrcp.pop %v465
        %v470 = vrcp.pop %v466
        %v471 = vrcp.pop %v467
        %v472 = vrcp.pop %v468
        %v473 = vmul.f32 %v446, %v469
        %v474 = vmul.f32 %v448, %v470
        %v475 = vmul.f32 %v450, %v471
        %v476 = vmul.f32 %v452, %v472
        %v477 = vld [vmem:[%s306] sm:$0xff]
        %v478 = vld [vmem:[%s306 + $0x8] sm:$0xff]
        %v479 = vld [vmem:[%s306 + $0x10] sm:$0xff]
        %v480 = vld [vmem:[%s306 + $0x18] sm:$0xff]
        %v481 = vld [vmem:[%s306 + $0x20] sm:$0xff]
        %v482 = vld [vmem:[%s306 + $0x28] sm:$0xff]
        %v483 = vld [vmem:[%s306 + $0x30] sm:$0xff]
        %v484 = vld [vmem:[%s306 + $0x38] sm:$0xff]
        %v486 = vsel %vm424, %v473, 0
        %v489 = vsel %vm424, %v474, 0
        %v492 = vsel %vm424, %v475, 0
        %v495 = vsel %vm424, %v476, 0
        %497 = vmatprep.subr.mxu0 0.0
        %498 = vmatpush1.msra.mxu0 %v477
        %499 = vmatprep.subr.mxu0 0.0
        %500 = vmatpush1.msra.mxu0 %v478
        %501 = vmatprep.subr.mxu0 0.0
        %502 = vmatpush1.msra.mxu0 %v479
        %503 = vmatprep.subr.mxu0 0.0
        %504 = vmatpush1.msra.mxu0 %v480
        %505 = vmatprep.subr.mxu0 0.0
        %506 = vmatpush1.msra.mxu0 %v481
        %507 = vmatprep.subr.mxu0 0.0
        %508 = vmatpush1.msra.mxu0 %v482
        %509 = vmatprep.subr.mxu0 0.0
        %510 = vmatpush1.msra.mxu0 %v483
        %511 = vmatprep.subr.mxu0 0.0
        %512 = vmatpush1.msra.mxu0 %v484
        %513 = vmatprep.subr.mxu0 0.0
        %514 = vmatpush1.msra.mxu0 0.0
        %515 = vmatprep.subr.mxu0 0.0
        %516 = vmatpush1.msra.mxu0 0.0
        %517 = vmatprep.subr.mxu0 0.0
        %518 = vmatpush1.msra.mxu0 0.0
        %519 = vmatprep.subr.mxu0 0.0
        %520 = vmatpush1.msra.mxu0 0.0
        %521 = vmatprep.subr.mxu0 0.0
        %522 = vmatpush1.msra.mxu0 0.0
        %523 = vmatprep.subr.mxu0 0.0
        %524 = vmatpush1.msra.mxu0 0.0
        %525 = vmatprep.subr.mxu0 0.0
        %526 = vmatpush1.msra.mxu0 0.0
        %527 = vmatprep.subr.mxu0 0.0
        %528 = vmatpush1.msra.mxu0 0.0
        %529 = vmatprep.subr.mxu0 0.0
        %530 = vmatpush1.msra.mxu0 0.0
        %531 = vmatprep.subr.mxu0 0.0
        %532 = vmatpush1.msra.mxu0 0.0
        %533 = vmatprep.subr.mxu0 0.0
        %534 = vmatpush1.msra.mxu0 0.0
        %535 = vmatprep.subr.mxu0 0.0
        %536 = vmatpush1.msra.mxu0 0.0
        %537 = vmatprep.subr.mxu0 0.0
        %538 = vmatpush1.msra.mxu0 0.0
        %539 = vmatprep.subr.mxu0 0.0
        %540 = vmatpush1.msra.mxu0 0.0
        %541 = vmatprep.subr.mxu0 0.0
        %542 = vmatpush1.msra.mxu0 0.0
        %543 = vmatprep.subr.mxu0 0.0
        %544 = vmatpush1.msra.mxu0 0.0
        %545 = vmatprep.subr.mxu0 0.0
        %546 = vmatpush1.msra.mxu0 0.0
        %547 = vmatprep.subr.mxu0 0.0
        %548 = vmatpush1.msra.mxu0 0.0
        %549 = vmatprep.subr.mxu0 0.0
        %550 = vmatpush1.msra.mxu0 0.0
        %551 = vmatprep.subr.mxu0 0.0
        %552 = vmatpush1.msra.mxu0 0.0
        %553 = vmatprep.subr.mxu0 0.0
        %554 = vmatpush1.msra.mxu0 0.0
        %555 = vmatprep.subr.mxu0 0.0
        %556 = vmatpush1.msra.mxu0 0.0
        %557 = vmatprep.subr.mxu0 0.0
        %558 = vmatpush1.msra.mxu0 0.0
        %559 = vmatprep.subr.mxu0 0.0
        %560 = vmatpush1.msra.mxu0 0.0
        %561 = vmatprep.mubr.f32.mxu0 0.0
        %562 = vmatmul.mubr.f32.gmra.mrb[0].mxu0 %v486
        %v563 = vpop.f32.mrb[0].mxu0
        %v564 = vadd.f32 0.0, %v563
        %v565 = vpop.f32.mrb[0].mxu0
        %566 = vmatprep.mubr.f32.mxu0 0.0
        %567 = vmatmul.mubr.f32.gmra.mrb[0].mxu0 %v489
        %v568 = vpop.f32.mrb[0].mxu0
        %v569 = vadd.f32 0.0, %v568
        %v570 = vpop.f32.mrb[0].mxu0
        %571 = vmatprep.mubr.f32.mxu0 0.0
        %572 = vmatmul.mubr.f32.gmra.mrb[0].mxu0 %v492
        %v573 = vpop.f32.mrb[0].mxu0
        %v574 = vadd.f32 0.0, %v573
        %v575 = vpop.f32.mrb[0].mxu0
        %576 = vmatprep.mubr.f32.mxu0 0.0
        %577 = vmatmul.mubr.f32.gmra.mrb[0].mxu0 %v495
        %v578 = vpop.f32.mrb[0].mxu0
        %v579 = vadd.f32 0.0, %v578
        %v580 = vpop.f32.mrb[0].mxu0
        %581 = vdwg.mxu0
        %vm582 = vcmp.gt.f32.partialorder %v564, 0.0
        %vm583 = vcmp.gt.f32.partialorder %v569, 0.0
        %vm584 = vcmp.gt.f32.partialorder %v574, 0.0
        %vm585 = vcmp.gt.f32.partialorder %v579, 0.0
        %v586 = vmin.f32 %v564, 0.0
        %v587 = vmin.f32 %v569, 0.0
        %v588 = vmin.f32 %v574, 0.0
        %v589 = vmin.f32 %v579, 0.0
        %v590 = vmul.f32 %v586, 1.442695
        %v591 = vpow.pop %v590
        %v592 = vmul.f32 %v587, 1.442695
        %v593 = vpow.pop %v592
        %v594 = vmul.f32 %v588, 1.442695
        %v595 = vpow.pop %v594
        %v596 = vmul.f32 %v589, 1.442695
        %v597 = vpow.pop %v596
        %v598 = vsub.f32 %v591, 1.0
        %v599 = vsub.f32 %v593, 1.0
        %v600 = vsub.f32 %v595, 1.0
        %v601 = vsub.f32 %v597, 1.0
        %v602 = vsel %vm582, %v564, %v598
        %v603 = vsel %vm583, %v569, %v599
        %v604 = vsel %vm584, %v574, %v600
        %v605 = vsel %vm585, %v579, %v601
        %606 = vst [vmem:[%s345] sm:$0xff] %v602
        %607 = vst [vmem:[%s345 + $0x8] sm:$0xff] %v603
        %608 = vst [vmem:[%s345 + $0x10] sm:$0xff] %v604
        %609 = vst [vmem:[%s345 + $0x18] sm:$0xff] %v605
        %s610 = sand.u32 %s149, 1
        %s611 = scalar_lea.sflag [#allocation4], %s610
        %s612 = sand.u32 %s149, 1
        %s613 = smul.addr %s612, 32
        %s614 = scalar_lea.vmem [#allocation6], %s613
        // Predicated region
        $region79: #{tpu_custom_call.1} parent=69 // pred_check
          %p615 = pneg %p159
        $region80: #{tpu_custom_call.1} parent=69 // pred_check_branch
          %617 = sbr.rel (%p615) target = $region82
        $region81: #{tpu_custom_call.1} parent=69 // pred_region
          %s618 = smul.u32 4, %s25
          %s620 = ssub.s32 512, 512
          %621 = vsyncadd %s611, %s620
          %s622 = smul.addr %s618, 2
          %s623 = sadd.s32 %s26, %s622
          %s624 = smul.addr %s623, 128
          %s625 = scalar_lea.hbm %s4, %s624
          %s626 = sshll.u32 %s614, 4
          %s627 = int_to_ptr.vmem [resolvable:$true] %s626
          %632 = dma.vmem_to_hbm [thread:$0]  %s627, 512, %s625, %s611, 128, 256, 8
        $region82: #{tpu_custom_call.1} parent=69 // pred_fallthru
          _
      $region70: #{tpu_custom_call.1} parent=5 // pred_fallthru
        _
      %p633 = scmp.le.s32.totalorder 2, %s16
      // Predicated region
      $region83: #{tpu_custom_call.1} parent=5 // pred_check
        %p634 = pneg %p633
      $region84: #{tpu_custom_call.1} parent=5 // pred_check_branch
        %636 = sbr.rel (%p634) target = $region86
      $region85: #{tpu_custom_call.1} parent=5 // pred_region
        %s637 = ssub.s32 %s16, 2
        // Predicated region
        $region87: #{tpu_custom_call.1} parent=85 // pred_check
          %p638 = pneg %p165
        $region88: #{tpu_custom_call.1} parent=85 // pred_check_branch
          %640 = sbr.rel (%p638) target = $region90
        $region89: #{tpu_custom_call.1} parent=85 // pred_region
          %s641 = sand.u32 %s150, 1
          %s642 = scalar_lea.sflag [#allocation4], %s641
          %s643 = sand.u32 %s150, 1
          %s644 = smul.addr %s643, 32
          %s645 = scalar_lea.vmem [#allocation6], %s644
          %646 = dma.done %s642, 512
        $region90: #{tpu_custom_call.1} parent=85 // pred_fallthru
          _
      $region86: #{tpu_custom_call.1} parent=5 // pred_fallthru
        _
    $region6: #{tpu_custom_call.1} parent=1 // loop_footer
      %s20 = sadd.s32 1, %s16
    $region7: #{tpu_custom_call.1} parent=1 // loop_footer_branch
      %15 = sbr.rel target = $region3
    $region8: #{tpu_custom_call.1} parent=1 // loop_exit
      _
    %647 = vsyncpa [#allocation3], 1
    %s648 = scalar_lea.sflag [#allocation3], 1
    %649 = vsyncpa %s648, 1
    %650 = vsyncpa [#allocation4], 1
    %s651 = scalar_lea.sflag [#allocation4], 1
    %652 = vsyncpa %s651, 1

</llo_original>
